<compile_context>
chip_gen: v6e
topology: v6e:2x2x1
jax: 0.10.0
libtpu: 0.0.40
codegen_flags: <defaults>
</compile_context>

<pallas_src>
import functools

import jax
import jax.numpy as jnp
from jax.experimental import pallas as pl
from jax.experimental.pallas import tpu as pltpu


def _round_up(x, m):
    return ((x + m - 1) // m) * m


def _wbce_kernel(*refs, has_pw, tile_r, l_cols, steps_per_core, rows, need_mask):
    # refs = (p_ref, t_ref[, pw_ref], acc_ref)
    #   p_ref, t_ref: (tile_r, L) tiles in native dtype (L = G*C, lane axis)
    #   pw_ref:       (1, L) f32 positive-class weights (pos_weights tiled G times)
    #   acc_ref:      (8, L) f32 per-core output block used as the accumulator
    if has_pw:
        p_ref, t_ref, pw_ref, acc_ref = refs
    else:
        p_ref, t_ref, acc_ref = refs

    s = pl.program_id(1)

    @pl.when(s == 0)
    def _init():
        acc_ref[...] = jnp.zeros_like(acc_ref)

    p = p_ref[...].astype(jnp.float32)
    t = t_ref[...].astype(jnp.float32)
    is_pos = t == 1.0                               # hard {0,1} labels
    # One EUP log per element: q = p where positive else (1 - p).
    q = jnp.where(is_pos, p, 1.0 - p)
    logq = jnp.maximum(jnp.log(q), -100.0)          # torch BCELoss -100 clamp
    if has_pw:
        w = jnp.where(is_pos, pw_ref[...].astype(jnp.float32), 1.0)
        contrib = w * logq                          # sign applied in the wrapper
    else:
        contrib = logq

    if need_mask:
        # Ragged tail / clamped duplicate blocks: zero out rows past the array.
        c = pl.program_id(0)
        row0 = (c * steps_per_core + s) * tile_r    # logical (unclamped) row start
        row_ids = jax.lax.broadcasted_iota(jnp.int32, (tile_r, 1), 0)
        contrib = jnp.where(row_ids < (rows - row0), contrib, 0.0)

    if tile_r % 8 == 0:
        # Fold the tile to (8, L) partials with pure VPU adds: no XLU reduce,
        # no SMEM scalar dependency on the per-step critical path.
        acc_ref[...] += contrib.reshape(tile_r // 8, 8, l_cols).sum(axis=0)
    else:
        # Tiny-input case: tile_r == rows < 8 (single block).
        acc_ref[0:tile_r, :] += contrib


def weighted_bce_loss(outputs, targets, pos_weights=None, *, block_bytes=2 << 20):
    """Pallas TPU version of WeightedBCELoss.forward.

    outputs: (B, C) probabilities (any float dtype, streamed natively)
    targets: (B, C) hard {0,1} labels (any numeric dtype)
    pos_weights: (C,) per-class positive weights or None
    Returns the scalar f32 loss equal to the PyTorch module's result.
    """
    B, C = outputs.shape
    assert targets.shape == (B, C)
    has_pw = pos_weights is not None

    # Pack G samples per row (contiguous bitcast reshape -> no HBM pass) so the
    # lane axis is G*C wide (112/128 dense for C=14) without any transpose.
    G = next(g for g in (8, 4, 2, 1) if B % g == 0)
    R, L = B // G, G * C
    p2 = outputs.reshape(R, L)
    t2 = targets.reshape(R, L)

    # Row-tile sizing: ~block_bytes per operand per grid step (multi-MB blocks
    # amortize the ~0.35 us per-step overhead; re-derived from dtype so bf16
    # inputs get 2x the rows for the same VMEM footprint).
    lpad = _round_up(L, 128)
    bytes_per_row = lpad * (outputs.dtype.itemsize + targets.dtype.itemsize)
    rows_target = max(8, (2 * block_bytes) // bytes_per_row)
    if R <= 8:
        tile_r = R                                   # single tiny block
    else:
        tile_r = max(8, (min(rows_target, (R // 8) * 8) // 8) * 8)
    num_blocks = pl.cdiv(R, tile_r)

    NC = 2                                           # megacore (v7x/v4/v5p) split
    steps = pl.cdiv(num_blocks, NC)
    need_clamp = (NC * steps) != num_blocks          # trailing duplicate blocks
    need_mask = (NC * steps * tile_r) != R           # clamp => mask always holds

    if need_clamp:
        last = num_blocks - 1
        row_map = lambda c, s: (jnp.minimum(c * steps + s, last), 0)
    else:
        row_map = lambda c, s: (c * steps + s, 0)

    in_specs = [pl.BlockSpec((tile_r, L), row_map),
                pl.BlockSpec((tile_r, L), row_map)]
    args = [p2, t2]
    if has_pw:
        pw_row = jnp.tile(jnp.asarray(pos_weights, jnp.float32).reshape(C), (G,))
        in_specs.append(pl.BlockSpec((1, L), lambda c, s: (0, 0)))
        args.append(pw_row.reshape(1, L))

    kernel = functools.partial(
        _wbce_kernel, has_pw=has_pw, tile_r=tile_r, l_cols=L,
        steps_per_core=steps, rows=R, need_mask=need_mask)

    cost = pl.CostEstimate(
        flops=8 * B * C,
        transcendentals=B * C,
        bytes_accessed=B * C * (outputs.dtype.itemsize + targets.dtype.itemsize)
        + NC * 8 * L * 4 + (L * 4 if has_pw else 0),
    )

    partials = pl.pallas_call(
        kernel,
        out_shape=jax.ShapeDtypeStruct((NC * 8, L), jnp.float32),
        grid=(NC, steps),
        in_specs=in_specs,
        out_specs=pl.BlockSpec((8, L), lambda c, s: (c, 0)),
        compiler_params=pltpu.CompilerParams(
            dimension_semantics=("parallel", "arbitrary"),
            vmem_limit_bytes=32 * 1024 * 1024,
        ),
        cost_estimate=cost,
    )(*args)

    # Tiny finalize (one XLA reduce of a (16, G*C) array): sum the per-core
    # partials and apply the -1/(B*C) scale (batch mean per class, / C).
    return jnp.sum(partials) * jnp.float32(-1.0 / (B * C))


def _reference(outputs, targets, pos_weights):
    # Pure-JAX reference mirroring the PyTorch loop semantics.
    p = outputs.astype(jnp.float32)
    t = targets.astype(jnp.float32)
    if pos_weights is None:
        w = jnp.ones_like(p)
    else:
        w = jnp.where(t == 1.0, jnp.asarray(pos_weights, jnp.float32)[None, :], 1.0)
    log_p = jnp.maximum(jnp.log(p), -100.0)
    log_1mp = jnp.maximum(jnp.log(1.0 - p), -100.0)
    elem = -w * (t * log_p + (1.0 - t) * log_1mp)
    per_class = jnp.mean(elem, axis=0)               # BCELoss mean over batch
    return jnp.sum(per_class) / outputs.shape[1]     # sum over classes / C


if __name__ == "__main__":
    def make_case(key, B, C, dtype):
        k1, k2 = jax.random.split(key)
        probs = jax.nn.sigmoid(jax.random.normal(k1, (B, C), jnp.float32)).astype(dtype)
        tgts = (jax.random.uniform(k2, (B, C)) > 0.5).astype(dtype)
        return probs, tgts

    C = 14                                           # CheXNet-style 14 classes
    pos_weights = 1.0 + 0.25 * jnp.arange(C, dtype=jnp.float32)

    # CheXbert-sized case: batch 8, per-class imbalance weights.
    outputs, targets = make_case(jax.random.PRNGKey(0), 8, C, jnp.float32)
    loss = jax.block_until_ready(weighted_bce_loss(outputs, targets, pos_weights))
    ref = _reference(outputs, targets, pos_weights)
    assert jnp.allclose(loss, ref, rtol=1e-5, atol=1e-5), (loss, ref)

    # No-pos_weights fast path.
    loss_nw = jax.block_until_ready(weighted_bce_loss(outputs, targets, None))
    ref_nw = _reference(outputs, targets, None)
    assert jnp.allclose(loss_nw, ref_nw, rtol=1e-5, atol=1e-5), (loss_nw, ref_nw)

    # Larger bf16 case: exercises native-dtype streaming, multi-block grid,
    # both-core split and the in-kernel tail mask.
    o3, t3 = make_case(jax.random.PRNGKey(1), 1000, C, jnp.bfloat16)
    l3 = jax.block_until_ready(weighted_bce_loss(o3, t3, pos_weights))
    r3 = _reference(o3, t3, pos_weights)
    assert jnp.allclose(l3, r3, rtol=1e-4, atol=1e-5), (l3, r3)

    # Odd batch (no 8-sample packing): exercises the G=1 / ragged-row path.
    o4, t4 = make_case(jax.random.PRNGKey(2), 19, C, jnp.float32)
    l4 = jax.block_until_ready(weighted_bce_loss(o4, t4, pos_weights))
    r4 = _reference(o4, t4, pos_weights)
    assert jnp.allclose(l4, r4, rtol=1e-5, atol=1e-5), (l4, r4)

    print("KERNEL_OK")
</pallas_src>

<mosaic_0001>
module attributes {stable_mosaic.version = 11 : i64} {
  func.func @_wbce_kernel(%arg0: i32, %arg1: i32, %arg2: memref<1x112xf32, #tpu.memory_space<vmem>>, %arg3: memref<1x112xf32, #tpu.memory_space<vmem>>, %arg4: memref<1x112xf32, #tpu.memory_space<vmem>>, %arg5: memref<8x112xf32, #tpu.memory_space<vmem>>) attributes {dimension_semantics = [#tpu.dimension_semantics<parallel>, #tpu.dimension_semantics<arbitrary>], iteration_bounds = array<i64: 2, 1>, scalar_prefetch = 0 : i64, scratch_operands = 0 : i64, tpu.core_type = #tpu.core_type<tc>, window_params = [{transform_indices = @transform_0, window_bounds = array<i64: 1, 112>}, {transform_indices = @transform_1, window_bounds = array<i64: 1, 112>}, {pipeline_mode = #tpu.pipeline_mode<synchronous>, transform_indices = @transform_2, window_bounds = array<i64: 1, 112>}, {transform_indices = @transform_3, window_bounds = array<i64: 8, 112>}]} {
    %c0_i32 = arith.constant 0 : i32
    %0 = arith.cmpi eq, %arg1, %c0_i32 : i32
    %1 = arith.extui %0 : i1 to i32
    %c0_i32_0 = arith.constant 0 : i32
    %2 = arith.cmpi ne, %1, %c0_i32_0 : i32
    scf.if %2 {
      %cst_16 = arith.constant 0.000000e+00 : f32
      %31 = vector.broadcast %cst_16 : f32 to vector<8x112xf32>
      %c0_17 = arith.constant 0 : index
      %c0_18 = arith.constant 0 : index
      %32 = vector.load %arg5[%c0_17, %c0_18] : memref<8x112xf32, #tpu.memory_space<vmem>>, vector<8x112xf32>
      tpu.vector_store %arg5[%c0_17, %c0_18], %31 {strides = array<i32>} : memref<8x112xf32, #tpu.memory_space<vmem>>, vector<8x112xf32>,
    } else {
    }
    %c0 = arith.constant 0 : index
    %c0_1 = arith.constant 0 : index
    %3 = vector.load %arg2[%c0, %c0_1] : memref<1x112xf32, #tpu.memory_space<vmem>>, vector<1x112xf32>
    %c0_2 = arith.constant 0 : index
    %c0_3 = arith.constant 0 : index
    %4 = vector.load %arg3[%c0_2, %c0_3] : memref<1x112xf32, #tpu.memory_space<vmem>>, vector<1x112xf32>
    %cst = arith.constant 1.000000e+00 : f32
    %5 = vector.broadcast %cst : f32 to vector<1x112xf32>
    %6 = arith.cmpf oeq, %4, %5 : vector<1x112xf32>
    %cst_4 = arith.constant 1.000000e+00 : f32
    %7 = vector.broadcast %cst_4 : f32 to vector<1x112xf32>
    %8 = arith.subf %7, %3 : vector<1x112xf32>
    %9 = arith.select %6, %3, %8 : vector<1x112xi1>, vector<1x112xf32>
    %10 = math.log %9 : vector<1x112xf32>
    %cst_5 = arith.constant -1.000000e+02 : f32
    %11 = vector.broadcast %cst_5 : f32 to vector<1x112xf32>
    %12 = arith.maximumf %10, %11 : vector<1x112xf32>
    %c0_6 = arith.constant 0 : index
    %c0_7 = arith.constant 0 : index
    %13 = vector.load %arg4[%c0_6, %c0_7] : memref<1x112xf32, #tpu.memory_space<vmem>>, vector<1x112xf32>
    %cst_8 = arith.constant 1.000000e+00 : f32
    %14 = vector.broadcast %cst_8 : f32 to vector<1x112xf32>
    %15 = arith.select %6, %13, %14 : vector<1x112xi1>, vector<1x112xf32>
    %16 = arith.mulf %15, %12 : vector<1x112xf32>
    %c1_i32 = arith.constant 1 : i32
    %17 = arith.muli %arg0, %c1_i32 : i32
    %18 = arith.addi %17, %arg1 : i32
    %c1_i32_9 = arith.constant 1 : i32
    %19 = arith.muli %18, %c1_i32_9 : i32
    %20 = tpu.iota {dimensions = array<i32: 0>} : vector<1x1xi32>
    %c1_i32_10 = arith.constant 1 : i32
    %21 = arith.subi %c1_i32_10, %19 : i32
    %22 = vector.broadcast %21 : i32 to vector<1x1xi32>
    %23 = arith.cmpi slt, %20, %22 : vector<1x1xi32>
    %cst_11 = arith.constant 0.000000e+00 : f32
    %24 = vector.shape_cast %23 : vector<1x1xi1> to vector<1x1xi1>
    %25 = vector.broadcast %24 : vector<1x1xi1> to vector<1x112xi1>
    %26 = vector.broadcast %cst_11 : f32 to vector<1x112xf32>
    %27 = arith.select %25, %16, %26 : vector<1x112xi1>, vector<1x112xf32>
    %c0_12 = arith.constant 0 : index
    %c0_13 = arith.constant 0 : index
    %28 = vector.load %arg5[%c0_12, %c0_13] : memref<8x112xf32, #tpu.memory_space<vmem>>, vector<1x112xf32>
    %29 = arith.addf %28, %27 : vector<1x112xf32>
    %c0_14 = arith.constant 0 : index
    %c0_15 = arith.constant 0 : index
    %30 = vector.load %arg5[%c0_14, %c0_15] : memref<8x112xf32, #tpu.memory_space<vmem>>, vector<1x112xf32>
    tpu.vector_store %arg5[%c0_14, %c0_15], %29 {strides = array<i32>} : memref<8x112xf32, #tpu.memory_space<vmem>>, vector<1x112xf32>,
    return
  }
  func.func @transform_0(%arg0: i32, %arg1: i32) -> (i32, i32) {
    %c1_i32 = arith.constant 1 : i32
    %0 = arith.muli %arg0, %c1_i32 : i32
    %1 = arith.addi %0, %arg1 : i32
    %c0_i32 = arith.constant 0 : i32
    %2 = arith.minsi %1, %c0_i32 : i32
    %c0_i32_0 = arith.constant 0 : i32
    %c0_i32_1 = arith.constant 0 : i32
    return %2, %c0_i32_0 : i32, i32
  }
  func.func @transform_1(%arg0: i32, %arg1: i32) -> (i32, i32) {
    %c1_i32 = arith.constant 1 : i32
    %0 = arith.muli %arg0, %c1_i32 : i32
    %1 = arith.addi %0, %arg1 : i32
    %c0_i32 = arith.constant 0 : i32
    %2 = arith.minsi %1, %c0_i32 : i32
    %c0_i32_0 = arith.constant 0 : i32
    %c0_i32_1 = arith.constant 0 : i32
    return %2, %c0_i32_0 : i32, i32
  }
  func.func @transform_2(%arg0: i32, %arg1: i32) -> (i32, i32) {
    %c0_i32 = arith.constant 0 : i32
    %c0_i32_0 = arith.constant 0 : i32
    %c0_i32_1 = arith.constant 0 : i32
    return %c0_i32, %c0_i32_0 : i32, i32
  }
  func.func @transform_3(%arg0: i32, %arg1: i32) -> (i32, i32) {
    %c0_i32 = arith.constant 0 : i32
    %c0_i32_0 = arith.constant 0 : i32
    return %arg0, %c0_i32 : i32, i32
  }
}

</mosaic_0001>

<llo_original>
// kernel: tpu_custom_call.1
$region0: #{tpu_custom_call.1}
  #allocation0 [shape = 'u32[]', space=smem, size = 0x4, offset = 0x4, fixed_abs, tag = 'smem constant byte address 0x4 - core index']
  #allocation1 [shape = 'u32[144,128]{1,0:T(1,128)}', space=vmem, size = 0x12000, scoped, tag = 'internal scratch']
  %s0 = inlined_call_operand.hbm [shape: f32[1,112], index: 0, kind: input, shape index: {}]
  %s1 = inlined_call_operand.vmem [shape: f32[1,112], index: 1, kind: input, shape index: {}]
  %s2 = inlined_call_operand.vmem [shape: f32[1,112], index: 2, kind: input, shape index: {}]
  %s3 = inlined_call_operand.hbm [shape: f32[16,112], index: 3, kind: output, shape index: {}]
  %s4 = sld [smem:[#allocation0]]
  $region53: #{tpu_custom_call.1} parent=0
    _
  %s6 = ssub.s32 1, %s4
  %s7 = scalar_select 0, %s6, %s4
  $region1: #{tpu_custom_call.1} parent=0
    #allocation2 [shape = 'u8[1024]{0}', space=vmem, size = 0x400, scoped, tag = 'input window, operand 0']
    #allocation3 [shape = 's32[2]{0}', space=sflag, size = 0x8, scoped, tag = 'scoped memory for tpu_custom_call.1']
    #allocation4 [shape = 's32[2]{0}', space=sflag, size = 0x8, scoped, tag = 'scoped memory for tpu_custom_call.1']
    #allocation5 [shape = 'u8[8192]{0}', space=vmem, size = 0x2000, scoped, tag = 'output window, operand 0']
    %8 = vsyncpa [#allocation3], 0
    %s9 = scalar_lea.sflag [#allocation3], 1
    %10 = vsyncpa %s9, 0
    %11 = vsyncpa [#allocation4], 0
    %s12 = scalar_lea.sflag [#allocation4], 1
    %13 = vsyncpa %s12, 0
    loop: start=0, step=1, limit=4
    $region2: #{tpu_custom_call.1} parent=1 // loop_pre_header
      _
    $region3: #{tpu_custom_call.1} parent=1 // loop_header
      %s15 = sphi 0, %s19
      %p16 = scmp.ge.s32.totalorder %s15, 4
      %s22 = sphi 0, %s34
      %s23 = sphi 0, %s30
      %s24 = sphi 0, %s22
      %s25 = sphi 0, %s23
      %s26 = sphi 0, %s24
      %s27 = sphi 0, %s25
      %s43 = sphi 0, %s45
      %s46 = sphi 0, %s43
      %s47 = sphi 0, %s46
      %s63 = sphi 0, %s47
      %s75 = sphi 0, %s77
      %s78 = sphi 0, %s75
      %s79 = sphi 0, %s78
      %s95 = sphi 0, %s79
      %s99 = sphi 0, %s99
      %s101 = sphi 0, %s99
      %s102 = sphi 0, %s101
      %s116 = sphi 0, %s102
      %s122 = sphi 0, %s124
      %s125 = sphi 0, %s122
      %s126 = sphi 0, %s125
      %s142 = sphi 0, %s126
    $region4: #{tpu_custom_call.1} parent=1 // loop_header_branch
      %18 = sbr.rel (%p16) target = $region8
    $region5: #{tpu_custom_call.1} parent=1 // loop_body
      %s20 = ssub.s32 %s15, 1
      %s21 = ssub.s32 %s15, 2
      %s28 = sadd.s32 1, %s23
      %p29 = scmp.ge.s32.totalorder %s28, 1
      %s30 = scalar_select %p29, 0, %s28
      %s31 = sadd.s32 1, %s22
      %s32 = scalar_select %p29, %s31, %s22
      %p33 = scmp.ge.s32.totalorder %s32, 2
      %s34 = scalar_select %p33, 0, %s32
      %s35 = sadd.s32 %s22, %s23
      %p36 = scmp.lt.s32.totalorder %s35, 0
      %s37 = scalar_select %p36, %s35, 0
      %s38 = sadd.s32 %s34, %s30
      %p39 = scmp.lt.s32.totalorder %s38, 0
      %s40 = scalar_select %p39, %s38, 0
      %s41 = ssub.s32 %s37, %s40
      %p42 = scmp.eq.s32.totalorder %s41, 0
      %s44 = sadd.s32 %s43, 1
      %s45 = scalar_select %p42, %s43, %s44
      %p48 = pneg %p42
      %p49 = scmp.eq.s32.totalorder %s15, 1
      %p50 = por %p48, %p49
      %p51 = scmp.ne.s32.totalorder %s43, %s46
      %p52 = scmp.eq.s32.totalorder %s15, 0
      %p53 = por %p51, %p52
      %p54 = scmp.ne.s32.totalorder %s43, %s46
      %p55 = scmp.eq.s32.totalorder %s20, 1
      %p56 = por %p54, %p55
      %p57 = scmp.ne.s32.totalorder %s46, %s47
      %p58 = scmp.eq.s32.totalorder %s20, 0
      %p59 = por %p57, %p58
      %p60 = scmp.ne.s32.totalorder %s46, %s47
      %p61 = scmp.eq.s32.totalorder %s21, 1
      %p62 = por %p60, %p61
      %p64 = scmp.ne.s32.totalorder %s47, %s63
      %p65 = scmp.eq.s32.totalorder %s21, 0
      %p66 = por %p64, %p65
      %s67 = sadd.s32 %s22, %s23
      %p68 = scmp.lt.s32.totalorder %s67, 0
      %s69 = scalar_select %p68, %s67, 0
      %s70 = sadd.s32 %s34, %s30
      %p71 = scmp.lt.s32.totalorder %s70, 0
      %s72 = scalar_select %p71, %s70, 0
      %s73 = ssub.s32 %s69, %s72
      %p74 = scmp.eq.s32.totalorder %s73, 0
      %s76 = sadd.s32 %s75, 1
      %s77 = scalar_select %p74, %s75, %s76
      %p80 = pneg %p74
      %p81 = scmp.eq.s32.totalorder %s15, 1
      %p82 = por %p80, %p81
      %p83 = scmp.ne.s32.totalorder %s75, %s78
      %p84 = scmp.eq.s32.totalorder %s15, 0
      %p85 = por %p83, %p84
      %p86 = scmp.ne.s32.totalorder %s75, %s78
      %p87 = scmp.eq.s32.totalorder %s20, 1
      %p88 = por %p86, %p87
      %p89 = scmp.ne.s32.totalorder %s78, %s79
      %p90 = scmp.eq.s32.totalorder %s20, 0
      %p91 = por %p89, %p90
      %p92 = scmp.ne.s32.totalorder %s78, %s79
      %p93 = scmp.eq.s32.totalorder %s21, 1
      %p94 = por %p92, %p93
      %p96 = scmp.ne.s32.totalorder %s79, %s95
      %p97 = scmp.eq.s32.totalorder %s21, 0
      %p98 = por %p96, %p97
      %s100 = sadd.s32 %s99, 1
      %p103 = scmp.eq.s32.totalorder %s15, 1
      %p104 = scmp.ne.s32.totalorder %s99, %s101
      %p105 = scmp.eq.s32.totalorder %s15, 0
      %p106 = por %p104, %p105
      %p107 = scmp.ne.s32.totalorder %s99, %s101
      %p108 = scmp.eq.s32.totalorder %s20, 1
      %p109 = por %p107, %p108
      %p110 = scmp.ne.s32.totalorder %s101, %s102
      %p111 = scmp.eq.s32.totalorder %s20, 0
      %p112 = por %p110, %p111
      %p113 = scmp.ne.s32.totalorder %s101, %s102
      %p114 = scmp.eq.s32.totalorder %s21, 1
      %p115 = por %p113, %p114
      %p117 = scmp.ne.s32.totalorder %s102, %s116
      %p118 = scmp.eq.s32.totalorder %s21, 0
      %p119 = por %p117, %p118
      %s120 = ssub.s32 %s22, %s34
      %p121 = scmp.eq.s32.totalorder %s120, 0
      %s123 = sadd.s32 %s122, 1
      %s124 = scalar_select %p121, %s122, %s123
      %p127 = pneg %p121
      %p128 = scmp.eq.s32.totalorder %s15, 1
      %p129 = por %p127, %p128
      %p130 = scmp.ne.s32.totalorder %s122, %s125
      %p131 = scmp.eq.s32.totalorder %s15, 0
      %p132 = por %p130, %p131
      %p133 = scmp.ne.s32.totalorder %s122, %s125
      %p134 = scmp.eq.s32.totalorder %s20, 1
      %p135 = por %p133, %p134
      %p136 = scmp.ne.s32.totalorder %s125, %s126
      %p137 = scmp.eq.s32.totalorder %s20, 0
      %p138 = por %p136, %p137
      %p139 = scmp.ne.s32.totalorder %s125, %s126
      %p140 = scmp.eq.s32.totalorder %s21, 1
      %p141 = por %p139, %p140
      %p143 = scmp.ne.s32.totalorder %s126, %s142
      %p144 = scmp.eq.s32.totalorder %s21, 0
      %p145 = por %p143, %p144
      %p146 = scmp.le.s32.totalorder 1, %s15
      %p147 = scmp.lt.s32.totalorder %s15, 3
      %p148 = pnand %p146, %p147
      %p149 = pneg %p148
      // Predicated region
      $region9: #{tpu_custom_call.1} parent=5 // pred_check
        _
      $region10: #{tpu_custom_call.1} parent=5 // pred_check_branch
        %151 = sbr.rel (%p148) target = $region12
      $region11: #{tpu_custom_call.1} parent=5 // pred_region
        %s152 = ssub.s32 %s15, 1
        // Predicated region
        $region13: #{tpu_custom_call.1} parent=11 // pred_check
          %p153 = pneg %p112
        $region14: #{tpu_custom_call.1} parent=11 // pred_check_branch
          %155 = sbr.rel (%p153) target = $region16
        $region15: #{tpu_custom_call.1} parent=11 // pred_region
          _
        $region16: #{tpu_custom_call.1} parent=11 // pred_fallthru
          _
      $region12: #{tpu_custom_call.1} parent=5 // pred_fallthru
        _
      %p156 = scmp.lt.s32.totalorder %s15, 2
      // Predicated region
      $region17: #{tpu_custom_call.1} parent=5 // pred_check
        %p157 = pneg %p156
      $region18: #{tpu_custom_call.1} parent=5 // pred_check_branch
        %159 = sbr.rel (%p157) target = $region20
      $region19: #{tpu_custom_call.1} parent=5 // pred_region
        // Predicated region
        $region21: #{tpu_custom_call.1} parent=19 // pred_check
          %p160 = pneg %p53
        $region22: #{tpu_custom_call.1} parent=19 // pred_check_branch
          %162 = sbr.rel (%p160) target = $region24
        $region23: #{tpu_custom_call.1} parent=19 // pred_region
          %s163 = sand.u32 %s43, 1
          %s164 = scalar_lea.sflag [#allocation3], %s163
          %s165 = sand.u32 %s43, 1
          %s166 = scalar_lea.vmem [#allocation2], %s165
          %s167 = sadd.s32 %s22, %s23
          %p168 = scmp.lt.s32.totalorder %s167, 0
          %s169 = scalar_select %p168, %s167, 0
          %s171 = ssub.s32 16, 16
          %172 = vsyncadd %s164, %s171
          %s173 = smul.addr %s169, 16
          %s174 = scalar_lea.hbm %s0, %s173
          %s176 = sshll.u32 %s166, 4
          %s177 = int_to_ptr.vmem [resolvable:$true] %s176
          %179 = dma.hbm_to_vmem [thread:$0]  %s174, 16, %s177, %s164
        $region24: #{tpu_custom_call.1} parent=19 // pred_fallthru
          _
        // Predicated region
        $region25: #{tpu_custom_call.1} parent=19 // pred_check
          %p180 = pneg %p85
        $region26: #{tpu_custom_call.1} parent=19 // pred_check_branch
          %182 = sbr.rel (%p180) target = $region28
        $region27: #{tpu_custom_call.1} parent=19 // pred_region
          %s183 = sadd.s32 %s22, %s23
          %p184 = scmp.lt.s32.totalorder %s183, 0
          %s185 = scalar_select %p184, %s183, 0
          %p186 = scmp.lt.s32.totalorder %s185, 0
          %s187 = scalar_select %p186, %s185, 0
          %s188 = scalar_lea.vmem %s1, %s187
          %s189 = sadd.s32 %s22, %s23
          %p190 = scmp.lt.s32.totalorder %s189, 0
          %s191 = scalar_select %p190, %s189, 0
        $region28: #{tpu_custom_call.1} parent=19 // pred_fallthru
          _
      $region20: #{tpu_custom_call.1} parent=5 // pred_fallthru
        _
      %p192 = scmp.le.s32.totalorder 1, %s15
      %p193 = scmp.lt.s32.totalorder %s15, 3
      %p194 = pnand %p192, %p193
      %p195 = pneg %p194
      // Predicated region
      $region29: #{tpu_custom_call.1} parent=5 // pred_check
        _
      $region30: #{tpu_custom_call.1} parent=5 // pred_check_branch
        %197 = sbr.rel (%p194) target = $region32
      $region31: #{tpu_custom_call.1} parent=5 // pred_region
        %s198 = ssub.s32 %s15, 1
        %s199 = sand.u32 %s46, 1
        %s200 = scalar_lea.sflag [#allocation3], %s199
        %s201 = sand.u32 %s46, 1
        %s202 = scalar_lea.vmem [#allocation2], %s201
        // Predicated region
        $region33: #{tpu_custom_call.1} parent=31 // pred_check
          %p203 = pneg %p59
        $region34: #{tpu_custom_call.1} parent=31 // pred_check_branch
          %205 = sbr.rel (%p203) target = $region36
        $region35: #{tpu_custom_call.1} parent=31 // pred_region
          %206 = dma.done %s200, 16
        $region36: #{tpu_custom_call.1} parent=31 // pred_fallthru
          _
        %s207 = sand.u32 %s46, 1
        %s208 = scalar_lea.sflag [#allocation3], %s207
        %s209 = sand.u32 %s46, 1
        %s210 = scalar_lea.vmem [#allocation2], %s209
        %p211 = pneg %p59
        %p212 = pneg %p56
        %s213 = sadd.s32 %s24, %s25
        %p214 = scmp.lt.s32.totalorder %s213, 0
        %s215 = scalar_select %p214, %s213, 0
        %p216 = scmp.lt.s32.totalorder %s215, 0
        %s217 = scalar_select %p216, %s215, 0
        %s218 = scalar_lea.vmem %s1, %s217
        %p219 = pneg %p91
        %p220 = pneg %p88
        %p221 = pneg %p112
        %p222 = pneg %p109
        %p223 = pneg %p138
        %p224 = pneg %p135
        %s225 = sand.u32 %s125, 1
        %s226 = scalar_lea.sflag [#allocation4], %s225
        %s227 = sand.u32 %s125, 1
        %s228 = smul.addr %s227, 8
        %s229 = scalar_lea.vmem [#allocation5], %s228
        %s230 = sadd.s32 %s24, %s25
        %p231 = scmp.lt.s32.totalorder %s230, 0
        %s232 = scalar_select %p231, %s230, 0
        %s233 = sadd.s32 %s24, %s25
        %p234 = scmp.lt.s32.totalorder %s233, 0
        %s235 = scalar_select %p234, %s233, 0
        %p236 = scmp.lt.s32.totalorder %s235, 0
        %s237 = scalar_select %p236, %s235, 0
        %s238 = scalar_lea.vmem %s1, %s237
        %s239 = sadd.s32 %s24, %s25
        %p240 = scmp.lt.s32.totalorder %s239, 0
        %s241 = scalar_select %p240, %s239, 0
        %p242 = scmp.eq.s32.totalorder %s25, 0
        // Predicated region
        $region37: #{tpu_custom_call.1} parent=31 // pred_check
          %p243 = pneg %p242
        $region38: #{tpu_custom_call.1} parent=31 // pred_check_branch
          %245 = sbr.rel (%p243) target = $region40
        $region39: #{tpu_custom_call.1} parent=31 // pred_region
          %vm246 = vcmask 916480
          %247 = vst.msk [vmem:[%s229] sm:$0xff] %vm246, 0.0
        $region40: #{tpu_custom_call.1} parent=31 // pred_fallthru
          _
        %v248 = vld [vmem:[%s202] sm:$0x1]
        %v249 = vld [vmem:[%s238] sm:$0x1]
        %vm250 = vcmp.eq.f32.partialorder %v249, 1.0
        %v251 = vsub.f32 1.0, %v248
        %v252 = vsel %vm250, %v248, %v251
        %v253 = vlog2.pop %v252
        %v254 = vmul.f32 %v253, 0.6931472
        %v255 = vmax.f32 %v254, -100.0
        %v256 = vld [vmem:[%s2] sm:$0x1]
        %v257 = vsel %vm250, %v256, 1.0
        %v258 = vmul.f32 %v257, %v255
        %s259 = sadd.s32 %s24, %s25
        %v260 = vlaneseq
        %v261 = vshrl.u32 %v260, 7
        %s262 = ssub.s32 1, %s259
        %v263 = vstv %s262
        %vm264 = vcmp.lt.s32.totalorder %v261, %v263
        %v265 = vsel %vm264, 1, 0
        %vm266 = vcmp.eq.s32.totalorder %v265, 1
        %v267 = vsel %vm266, %v258, 0.0
        %v268 = vld [vmem:[%s229] sm:$0x1]
        %v269 = vadd.f32 %v268, %v267
        %vm270 = vcmask 909312
        %271 = vst.msk [vmem:[%s229] sm:$0x1] %vm270, %v269
        %s272 = sand.u32 %s125, 1
        %s273 = scalar_lea.sflag [#allocation4], %s272
        %s274 = sand.u32 %s125, 1
        %s275 = smul.addr %s274, 8
        %s276 = scalar_lea.vmem [#allocation5], %s275
        // Predicated region
        $region41: #{tpu_custom_call.1} parent=31 // pred_check
          %p277 = pneg %p135
        $region42: #{tpu_custom_call.1} parent=31 // pred_check_branch
          %279 = sbr.rel (%p277) target = $region44
        $region43: #{tpu_custom_call.1} parent=31 // pred_region
          %s281 = ssub.s32 128, 128
          %282 = vsyncadd %s273, %s281
          %s283 = smul.addr %s24, 128
          %s284 = scalar_lea.hbm %s3, %s283
          %s286 = sshll.u32 %s276, 4
          %s287 = int_to_ptr.vmem [resolvable:$true] %s286
          %289 = dma.vmem_to_hbm [thread:$0]  %s287, 128, %s284, %s273
        $region44: #{tpu_custom_call.1} parent=31 // pred_fallthru
          _
      $region32: #{tpu_custom_call.1} parent=5 // pred_fallthru
        _
      %p290 = scmp.le.s32.totalorder 2, %s15
      // Predicated region
      $region45: #{tpu_custom_call.1} parent=5 // pred_check
        %p291 = pneg %p290
      $region46: #{tpu_custom_call.1} parent=5 // pred_check_branch
        %293 = sbr.rel (%p291) target = $region48
      $region47: #{tpu_custom_call.1} parent=5 // pred_region
        %s294 = ssub.s32 %s15, 2
        // Predicated region
        $region49: #{tpu_custom_call.1} parent=47 // pred_check
          %p295 = pneg %p141
        $region50: #{tpu_custom_call.1} parent=47 // pred_check_branch
          %297 = sbr.rel (%p295) target = $region52
        $region51: #{tpu_custom_call.1} parent=47 // pred_region
          %s298 = sand.u32 %s126, 1
          %s299 = scalar_lea.sflag [#allocation4], %s298
          %s300 = sand.u32 %s126, 1
          %s301 = smul.addr %s300, 8
          %s302 = scalar_lea.vmem [#allocation5], %s301
          %303 = dma.done %s299, 128
        $region52: #{tpu_custom_call.1} parent=47 // pred_fallthru
          _
      $region48: #{tpu_custom_call.1} parent=5 // pred_fallthru
        _
    $region6: #{tpu_custom_call.1} parent=1 // loop_footer
      %s19 = sadd.s32 1, %s15
    $region7: #{tpu_custom_call.1} parent=1 // loop_footer_branch
      %14 = sbr.rel target = $region3
    $region8: #{tpu_custom_call.1} parent=1 // loop_exit
      _
    %304 = vsyncpa [#allocation3], 1
    %s305 = scalar_lea.sflag [#allocation3], 1
    %306 = vsyncpa %s305, 1
    %307 = vsyncpa [#allocation4], 1
    %s308 = scalar_lea.sflag [#allocation4], 1
    %309 = vsyncpa %s308, 1

</llo_original>
